<compile_context>
chip_gen: v5e
topology: v5e:2x2
jax: 0.10.0
libtpu: 0.0.40
codegen_flags: <defaults>
</compile_context>

<pallas_src>
import jax
import jax.numpy as jnp
from jax.experimental import pallas as pl
from jax.experimental.pallas import tpu as pltpu


def _pick_hw_tile(hw: int, max_tile: int = 2048) -> int:
    """Largest HW tile <= max_tile that tiles HW exactly (lane-aligned if tiled)."""
    if hw <= max_tile:
        return hw
    t = (max_tile // 128) * 128
    while t >= 128:
        if hw % t == 0:
            return t
        t -= 128
    return hw  # no lane-aligned divisor; fall back to a single (large) tile


def _make_kernel(act_layer: str, inv_hw: float, n_hw_tiles: int):
    def epilogue_kernel(x_ref, w1t_ref, scale_ref, shift_ref, o_ref, acc_ref):
        k = pl.program_id(1)

        @pl.when(k == 0)
        def _init():
            acc_ref[...] = jnp.zeros_like(acc_ref)

        x = x_ref[0]  # (C_in, tHW), compute dtype (bf16)
        # 1x1 conv == channel matmul; HW stays on the 128-lane axis.
        h = jnp.dot(w1t_ref[...], x,
                    preferred_element_type=jnp.float32)      # (C_out, tHW) f32
        # Folded BatchNorm (eval): per-channel affine, broadcast along lanes.
        h = h * scale_ref[...] + shift_ref[...]
        if act_layer == "relu":
            h = jnp.maximum(h, 0.0)
        elif act_layer == "swish":
            h = h * jax.nn.sigmoid(h)
        else:
            raise NotImplementedError(act_layer)
        # Global average pool: partial per-channel sum over this HW tile.
        # Lane-dense minor-dim reduce; the 1/HW factor is applied at finalize.
        acc_ref[...] += jnp.sum(h, axis=1, keepdims=True)     # (C_out, 1) f32

        @pl.when(k == n_hw_tiles - 1)
        def _finalize():
            o_ref[0] = (acc_ref[...] * inv_hw).astype(o_ref.dtype)

    return epilogue_kernel


def epilogue_forward(x_nchw, conv_w, bn_gamma, bn_beta, bn_mean, bn_var,
                     fc_w, fc_b, *, act_layer="relu", bn_eps=1e-3,
                     compute_dtype=jnp.bfloat16, max_hw_tile=2048):
    """Eval-mode forward of the GPUNet Epilogue.

    x_nchw : (N, C_in, H, W)
    conv_w : (C_out, C_in, 1, 1)   (bias=False)
    bn_*   : (C_out,)              (eval-mode running stats)
    fc_w   : (num_classes, C_out); fc_b : (num_classes,)
    """
    N, C_in, H, W = x_nchw.shape
    C_out = conv_w.shape[0]
    HW = H * W

    # Layout glue: keep NCHW; just merge H,W (free reshape, no HBM transpose).
    x = x_nchw.reshape(N, C_in, HW).astype(compute_dtype)
    w1t = conv_w.reshape(C_out, C_in).astype(compute_dtype)        # (C_out, C_in)

    # Fold BatchNorm (eval) into a per-channel affine, kept in f32.
    inv_std = 1.0 / jnp.sqrt(bn_var.astype(jnp.float32) + bn_eps)
    scale = (bn_gamma * inv_std).astype(jnp.float32).reshape(C_out, 1)
    shift = (bn_beta - bn_mean * bn_gamma * inv_std).astype(jnp.float32).reshape(C_out, 1)

    tHW = _pick_hw_tile(HW, max_hw_tile)
    n_hw_tiles = HW // tHW

    kernel = _make_kernel(act_layer, 1.0 / float(HW), n_hw_tiles)

    pooled = pl.pallas_call(
        kernel,
        out_shape=jax.ShapeDtypeStruct((N, C_out, 1), jnp.float32),
        grid_spec=pltpu.PrefetchScalarGridSpec(
            num_scalar_prefetch=0,
            grid=(N, n_hw_tiles),
            in_specs=[
                pl.BlockSpec((1, C_in, tHW), lambda n, k: (n, 0, k)),  # x tile
                pl.BlockSpec((C_out, C_in), lambda n, k: (0, 0)),      # conv weight (resident)
                pl.BlockSpec((C_out, 1), lambda n, k: (0, 0)),         # BN scale
                pl.BlockSpec((C_out, 1), lambda n, k: (0, 0)),         # BN shift
            ],
            out_specs=pl.BlockSpec((1, C_out, 1), lambda n, k: (n, 0, 0)),
            scratch_shapes=[pltpu.VMEM((C_out, 1), jnp.float32)],
        ),
        compiler_params=pltpu.CompilerParams(
            dimension_semantics=("parallel", "arbitrary"),
            vmem_limit_bytes=32 * 1024 * 1024,
        ),
    )(x, w1t, scale, shift)

    pooled = pooled.reshape(N, C_out)   # Flatten (pool output is spatially 1x1)
    # Dropout(p=0.2) is identity in eval mode.
    # Final Linear, hoisted out of the kernel: one batched lane-dense matmul.
    logits = pooled @ jnp.transpose(fc_w).astype(jnp.float32) \
        + fc_b[None, :].astype(jnp.float32)
    return logits.astype(x_nchw.dtype)


def _reference(x_nchw, conv_w, bn_gamma, bn_beta, bn_mean, bn_var,
               fc_w, fc_b, act_layer="relu", bn_eps=1e-3):
    C_out, C_in = conv_w.shape[0], conv_w.shape[1]
    h = jnp.einsum("nchw,oc->nohw", x_nchw, conv_w.reshape(C_out, C_in))
    inv_std = 1.0 / jnp.sqrt(bn_var + bn_eps)
    h = (h - bn_mean[None, :, None, None]) * (bn_gamma * inv_std)[None, :, None, None] \
        + bn_beta[None, :, None, None]
    if act_layer == "relu":
        h = jnp.maximum(h, 0.0)
    else:
        h = h * jax.nn.sigmoid(h)
    pooled = jnp.mean(h, axis=(2, 3))                 # (N, C_out)
    return pooled @ fc_w.T + fc_b[None, :]


if __name__ == "__main__":
    # Small shapes consistent with the module: N=2, C_in=4, C_out=8, H=W=16, classes=16
    N, C_in, C_out, H, W, NUM_CLASSES = 2, 4, 8, 16, 16, 16

    key = jax.random.PRNGKey(0)
    k_x, k_w1, k_fc, k_b, k_g, k_be, k_m, k_v = jax.random.split(key, 8)

    x = jax.random.normal(k_x, (N, C_in, H, W), dtype=jnp.float32)
    conv_w = jax.random.normal(k_w1, (C_out, C_in, 1, 1), dtype=jnp.float32) * 0.1
    bn_gamma = 1.0 + 0.1 * jax.random.normal(k_g, (C_out,), dtype=jnp.float32)
    bn_beta = 0.1 * jax.random.normal(k_be, (C_out,), dtype=jnp.float32)
    bn_mean = 0.1 * jax.random.normal(k_m, (C_out,), dtype=jnp.float32)
    bn_var = jnp.abs(1.0 + 0.1 * jax.random.normal(k_v, (C_out,), dtype=jnp.float32))
    fc_w = jax.random.normal(k_fc, (NUM_CLASSES, C_out), dtype=jnp.float32) * 0.1
    fc_b = 0.01 * jax.random.normal(k_b, (NUM_CLASSES,), dtype=jnp.float32)

    out = epilogue_forward(x, conv_w, bn_gamma, bn_beta, bn_mean, bn_var,
                           fc_w, fc_b, act_layer="relu")
    out = jax.block_until_ready(out)
    assert out.shape == (N, NUM_CLASSES)

    # Tight check vs. a reference using the same bf16 input quantization as the kernel.
    xq = x.astype(jnp.bfloat16).astype(jnp.float32)
    wq = conv_w.astype(jnp.bfloat16).astype(jnp.float32)
    ref_q = _reference(xq, wq, bn_gamma, bn_beta, bn_mean, bn_var, fc_w, fc_b)
    assert jnp.allclose(out, ref_q, atol=2e-3, rtol=2e-3), "mismatch vs bf16-quantized reference"

    # Loose check vs. the full-precision module reference (only bf16 input cast differs).
    ref = _reference(x, conv_w, bn_gamma, bn_beta, bn_mean, bn_var, fc_w, fc_b)
    assert jnp.allclose(out, ref, atol=5e-2, rtol=5e-2), "mismatch vs f32 reference"

    print("KERNEL_OK")
</pallas_src>

<mosaic_0001>
module attributes {stable_mosaic.version = 11 : i64} {
  func.func @epilogue_kernel(%arg0: i32, %arg1: i32, %arg2: memref<1x4x256xbf16, #tpu.memory_space<vmem>>, %arg3: memref<8x4xbf16, #tpu.memory_space<vmem>>, %arg4: memref<8x1xf32, #tpu.memory_space<vmem>>, %arg5: memref<8x1xf32, #tpu.memory_space<vmem>>, %arg6: memref<1x8x1xf32, #tpu.memory_space<vmem>>, %arg7: memref<8x1xf32, #tpu.memory_space<vmem>>) attributes {dimension_semantics = [#tpu.dimension_semantics<parallel>, #tpu.dimension_semantics<arbitrary>], iteration_bounds = array<i64: 2, 1>, scalar_prefetch = 0 : i64, scratch_operands = 1 : i64, tpu.core_type = #tpu.core_type<tc>, window_params = [{transform_indices = @transform_0, window_bounds = array<i64: 1, 4, 256>}, {pipeline_mode = #tpu.pipeline_mode<synchronous>, transform_indices = @transform_1, window_bounds = array<i64: 8, 4>}, {pipeline_mode = #tpu.pipeline_mode<synchronous>, transform_indices = @transform_2, window_bounds = array<i64: 8, 1>}, {pipeline_mode = #tpu.pipeline_mode<synchronous>, transform_indices = @transform_3, window_bounds = array<i64: 8, 1>}, {transform_indices = @transform_4, window_bounds = array<i64: 1, 8, 1>}]} {
    %c0_i32 = arith.constant 0 : i32
    %0 = arith.cmpi eq, %arg1, %c0_i32 : i32
    %1 = arith.extui %0 : i1 to i32
    %c0_i32_0 = arith.constant 0 : i32
    %2 = arith.cmpi ne, %1, %c0_i32_0 : i32
    scf.if %2 {
      %cst_17 = arith.constant 0.000000e+00 : f32
      %23 = vector.broadcast %cst_17 : f32 to vector<8x1xf32>
      %c0_18 = arith.constant 0 : index
      %c0_19 = arith.constant 0 : index
      %24 = vector.load %arg7[%c0_18, %c0_19] : memref<8x1xf32, #tpu.memory_space<vmem>>, vector<8x1xf32>
      tpu.vector_store %arg7[%c0_18, %c0_19], %23 {strides = array<i32>} : memref<8x1xf32, #tpu.memory_space<vmem>>, vector<8x1xf32>,
    } else {
    }
    %c0 = arith.constant 0 : index
    %c0_1 = arith.constant 0 : index
    %c0_2 = arith.constant 0 : index
    %3 = vector.load %arg2[%c0, %c0_1, %c0_2] : memref<1x4x256xbf16, #tpu.memory_space<vmem>>, vector<1x4x256xbf16>
    %4 = vector.shape_cast %3 : vector<1x4x256xbf16> to vector<4x256xbf16>
    %c0_3 = arith.constant 0 : index
    %c0_4 = arith.constant 0 : index
    %5 = vector.load %arg3[%c0_3, %c0_4] : memref<8x4xbf16, #tpu.memory_space<vmem>>, vector<8x4xbf16>
    %cst = arith.constant dense<0.000000e+00> : vector<8x256xf32>
    %6 = tpu.matmul %5, %4, %cst {dimension_numbers = #tpu.dot_dimension_numbers<[1], [0], [0], [1], [0, 0, 1, 1], [], []>} : vector<8x4xbf16>, vector<4x256xbf16>, vector<8x256xf32> -> vector<8x256xf32>
    %c0_5 = arith.constant 0 : index
    %c0_6 = arith.constant 0 : index
    %7 = vector.load %arg4[%c0_5, %c0_6] : memref<8x1xf32, #tpu.memory_space<vmem>>, vector<8x1xf32>
    %8 = vector.broadcast %7 : vector<8x1xf32> to vector<8x256xf32>
    %9 = arith.mulf %6, %8 : vector<8x256xf32>
    %c0_7 = arith.constant 0 : index
    %c0_8 = arith.constant 0 : index
    %10 = vector.load %arg5[%c0_7, %c0_8] : memref<8x1xf32, #tpu.memory_space<vmem>>, vector<8x1xf32>
    %11 = vector.broadcast %10 : vector<8x1xf32> to vector<8x256xf32>
    %12 = arith.addf %9, %11 : vector<8x256xf32>
    %cst_9 = arith.constant 0.000000e+00 : f32
    %13 = vector.broadcast %cst_9 : f32 to vector<8x256xf32>
    %14 = arith.maximumf %12, %13 : vector<8x256xf32>
    %c0_10 = arith.constant 0 : index
    %c0_11 = arith.constant 0 : index
    %15 = vector.load %arg7[%c0_10, %c0_11] : memref<8x1xf32, #tpu.memory_space<vmem>>, vector<8x1xf32>
    %cst_12 = arith.constant dense<0.000000e+00> : vector<8xf32>
    %16 = vector.multi_reduction <add>, %14, %cst_12 [1] : vector<8x256xf32> to vector<8xf32>
    %17 = vector.shape_cast %16 : vector<8xf32> to vector<8x1xf32>
    %18 = arith.addf %15, %17 : vector<8x1xf32>
    %c0_13 = arith.constant 0 : index
    %c0_14 = arith.constant 0 : index
    %19 = vector.load %arg7[%c0_13, %c0_14] : memref<8x1xf32, #tpu.memory_space<vmem>>, vector<8x1xf32>
    tpu.vector_store %arg7[%c0_13, %c0_14], %18 {strides = array<i32>} : memref<8x1xf32, #tpu.memory_space<vmem>>, vector<8x1xf32>,
    %c0_i32_15 = arith.constant 0 : i32
    %20 = arith.cmpi eq, %arg1, %c0_i32_15 : i32
    %21 = arith.extui %20 : i1 to i32
    %c0_i32_16 = arith.constant 0 : i32
    %22 = arith.cmpi ne, %21, %c0_i32_16 : i32
    scf.if %22 {
      %c0_17 = arith.constant 0 : index
      %c0_18 = arith.constant 0 : index
      %23 = vector.load %arg7[%c0_17, %c0_18] : memref<8x1xf32, #tpu.memory_space<vmem>>, vector<8x1xf32>
      %cst_19 = arith.constant 3.906250e-03 : f32
      %24 = vector.broadcast %cst_19 : f32 to vector<8x1xf32>
      %25 = arith.mulf %23, %24 : vector<8x1xf32>
      %c0_20 = arith.constant 0 : index
      %c0_21 = arith.constant 0 : index
      %c0_22 = arith.constant 0 : index
      %26 = vector.load %arg6[%c0_20, %c0_21, %c0_22] : memref<1x8x1xf32, #tpu.memory_space<vmem>>, vector<1x8x1xf32>
      %27 = vector.shape_cast %26 : vector<1x8x1xf32> to vector<8x1xf32>
      %28 = vector.shape_cast %25 : vector<8x1xf32> to vector<1x8x1xf32>
      tpu.vector_store %arg6[%c0_20, %c0_21, %c0_22], %28 {strides = array<i32>} : memref<1x8x1xf32, #tpu.memory_space<vmem>>, vector<1x8x1xf32>,
    } else {
    }
    return
  }
  func.func @transform_0(%arg0: i32, %arg1: i32) -> (i32, i32, i32) {
    %c0_i32 = arith.constant 0 : i32
    %c0_i32_0 = arith.constant 0 : i32
    return %arg0, %c0_i32, %arg1 : i32, i32, i32
  }
  func.func @transform_1(%arg0: i32, %arg1: i32) -> (i32, i32) {
    %c0_i32 = arith.constant 0 : i32
    %c0_i32_0 = arith.constant 0 : i32
    %c0_i32_1 = arith.constant 0 : i32
    return %c0_i32, %c0_i32_0 : i32, i32
  }
  func.func @transform_2(%arg0: i32, %arg1: i32) -> (i32, i32) {
    %c0_i32 = arith.constant 0 : i32
    %c0_i32_0 = arith.constant 0 : i32
    %c0_i32_1 = arith.constant 0 : i32
    return %c0_i32, %c0_i32_0 : i32, i32
  }
  func.func @transform_3(%arg0: i32, %arg1: i32) -> (i32, i32) {
    %c0_i32 = arith.constant 0 : i32
    %c0_i32_0 = arith.constant 0 : i32
    %c0_i32_1 = arith.constant 0 : i32
    return %c0_i32, %c0_i32_0 : i32, i32
  }
  func.func @transform_4(%arg0: i32, %arg1: i32) -> (i32, i32, i32) {
    %c0_i32 = arith.constant 0 : i32
    %c0_i32_0 = arith.constant 0 : i32
    %c0_i32_1 = arith.constant 0 : i32
    return %arg0, %c0_i32, %c0_i32_0 : i32, i32, i32
  }
}

</mosaic_0001>

<llo_original>
// kernel: tpu_custom_call.1
$region0: #{tpu_custom_call.1}
  #allocation0 [shape = 'u32[]', space=smem, size = 0x4, offset = 0x4, fixed_abs, tag = 'smem constant byte address 0x4 - core index']
  #allocation1 [shape = 'u32[72,128]{1,0:T(1,128)}', space=vmem, size = 0x9000, scoped, tag = 'internal scratch']
  #allocation2 [shape = 'f32[8,1]{1,0:T(8,128)}', space=vmem, size = 0x1000, scoped, tag = 'scratch operand']
  %s0 = inlined_call_operand.vmem [shape: bf16[2,4,256], index: 0, kind: input, shape index: {}]
  %s1 = inlined_call_operand.vmem [shape: bf16[8,4], index: 1, kind: input, shape index: {}]
  %s2 = inlined_call_operand.vmem [shape: f32[8,1], index: 2, kind: input, shape index: {}]
  %s3 = inlined_call_operand.vmem [shape: f32[8,1], index: 3, kind: input, shape index: {}]
  %s4 = inlined_call_operand.vmem [shape: f32[2,8,1], index: 4, kind: output, shape index: {}]
  %s5 = sld [smem:[#allocation0]]
  $region57: #{tpu_custom_call.1} parent=0
    _
  %s7 = ssub.s32 1, %s5
  %s8 = scalar_select 0, %s7, %s5
  loop: start=0, step=1, limit=4
  $region2: #{tpu_custom_call.1} parent=0 // loop_pre_header
    _
  $region3: #{tpu_custom_call.1} parent=0 // loop_header
    %s10 = sphi 0, %s14
    %p11 = scmp.ge.s32.totalorder %s10, 4
    %s17 = sphi 0, %s29
    %s18 = sphi 0, %s25
    %s19 = sphi 0, %s17
    %s20 = sphi 0, %s18
    %s21 = sphi 0, %s19
    %s22 = sphi 0, %s20
    %s34 = sphi 0, %s36
    %s37 = sphi 0, %s34
    %s38 = sphi 0, %s37
    %s54 = sphi 0, %s38
    %s58 = sphi 0, %s58
    %s60 = sphi 0, %s58
    %s61 = sphi 0, %s60
    %s75 = sphi 0, %s61
    %s79 = sphi 0, %s79
    %s81 = sphi 0, %s79
    %s82 = sphi 0, %s81
    %s96 = sphi 0, %s82
    %s100 = sphi 0, %s100
    %s102 = sphi 0, %s100
    %s103 = sphi 0, %s102
    %s117 = sphi 0, %s103
    %s123 = sphi 0, %s125
    %s126 = sphi 0, %s123
    %s127 = sphi 0, %s126
    %s143 = sphi 0, %s127
  $region4: #{tpu_custom_call.1} parent=0 // loop_header_branch
    %13 = sbr.rel (%p11) target = $region8
  $region5: #{tpu_custom_call.1} parent=0 // loop_body
    %s15 = ssub.s32 %s10, 1
    %s16 = ssub.s32 %s10, 2
    %s23 = sadd.s32 1, %s18
    %p24 = scmp.ge.s32.totalorder %s23, 1
    %s25 = scalar_select %p24, 0, %s23
    %s26 = sadd.s32 1, %s17
    %s27 = scalar_select %p24, %s26, %s17
    %p28 = scmp.ge.s32.totalorder %s27, 2
    %s29 = scalar_select %p28, 0, %s27
    %s30 = ssub.s32 %s17, %s29
    %s31 = ssub.s32 %s18, %s25
    %s32 = sor.u32 %s30, %s31
    %p33 = scmp.eq.s32.totalorder %s32, 0
    %s35 = sadd.s32 %s34, 1
    %s36 = scalar_select %p33, %s34, %s35
    %p39 = pneg %p33
    %p40 = scmp.eq.s32.totalorder %s10, 1
    %p41 = por %p39, %p40
    %p42 = scmp.ne.s32.totalorder %s34, %s37
    %p43 = scmp.eq.s32.totalorder %s10, 0
    %p44 = por %p42, %p43
    %p45 = scmp.ne.s32.totalorder %s34, %s37
    %p46 = scmp.eq.s32.totalorder %s15, 1
    %p47 = por %p45, %p46
    %p48 = scmp.ne.s32.totalorder %s37, %s38
    %p49 = scmp.eq.s32.totalorder %s15, 0
    %p50 = por %p48, %p49
    %p51 = scmp.ne.s32.totalorder %s37, %s38
    %p52 = scmp.eq.s32.totalorder %s16, 1
    %p53 = por %p51, %p52
    %p55 = scmp.ne.s32.totalorder %s38, %s54
    %p56 = scmp.eq.s32.totalorder %s16, 0
    %p57 = por %p55, %p56
    %s59 = sadd.s32 %s58, 1
    %p62 = scmp.eq.s32.totalorder %s10, 1
    %p63 = scmp.ne.s32.totalorder %s58, %s60
    %p64 = scmp.eq.s32.totalorder %s10, 0
    %p65 = por %p63, %p64
    %p66 = scmp.ne.s32.totalorder %s58, %s60
    %p67 = scmp.eq.s32.totalorder %s15, 1
    %p68 = por %p66, %p67
    %p69 = scmp.ne.s32.totalorder %s60, %s61
    %p70 = scmp.eq.s32.totalorder %s15, 0
    %p71 = por %p69, %p70
    %p72 = scmp.ne.s32.totalorder %s60, %s61
    %p73 = scmp.eq.s32.totalorder %s16, 1
    %p74 = por %p72, %p73
    %p76 = scmp.ne.s32.totalorder %s61, %s75
    %p77 = scmp.eq.s32.totalorder %s16, 0
    %p78 = por %p76, %p77
    %s80 = sadd.s32 %s79, 1
    %p83 = scmp.eq.s32.totalorder %s10, 1
    %p84 = scmp.ne.s32.totalorder %s79, %s81
    %p85 = scmp.eq.s32.totalorder %s10, 0
    %p86 = por %p84, %p85
    %p87 = scmp.ne.s32.totalorder %s79, %s81
    %p88 = scmp.eq.s32.totalorder %s15, 1
    %p89 = por %p87, %p88
    %p90 = scmp.ne.s32.totalorder %s81, %s82
    %p91 = scmp.eq.s32.totalorder %s15, 0
    %p92 = por %p90, %p91
    %p93 = scmp.ne.s32.totalorder %s81, %s82
    %p94 = scmp.eq.s32.totalorder %s16, 1
    %p95 = por %p93, %p94
    %p97 = scmp.ne.s32.totalorder %s82, %s96
    %p98 = scmp.eq.s32.totalorder %s16, 0
    %p99 = por %p97, %p98
    %s101 = sadd.s32 %s100, 1
    %p104 = scmp.eq.s32.totalorder %s10, 1
    %p105 = scmp.ne.s32.totalorder %s100, %s102
    %p106 = scmp.eq.s32.totalorder %s10, 0
    %p107 = por %p105, %p106
    %p108 = scmp.ne.s32.totalorder %s100, %s102
    %p109 = scmp.eq.s32.totalorder %s15, 1
    %p110 = por %p108, %p109
    %p111 = scmp.ne.s32.totalorder %s102, %s103
    %p112 = scmp.eq.s32.totalorder %s15, 0
    %p113 = por %p111, %p112
    %p114 = scmp.ne.s32.totalorder %s102, %s103
    %p115 = scmp.eq.s32.totalorder %s16, 1
    %p116 = por %p114, %p115
    %p118 = scmp.ne.s32.totalorder %s103, %s117
    %p119 = scmp.eq.s32.totalorder %s16, 0
    %p120 = por %p118, %p119
    %s121 = ssub.s32 %s17, %s29
    %p122 = scmp.eq.s32.totalorder %s121, 0
    %s124 = sadd.s32 %s123, 1
    %s125 = scalar_select %p122, %s123, %s124
    %p128 = pneg %p122
    %p129 = scmp.eq.s32.totalorder %s10, 1
    %p130 = por %p128, %p129
    %p131 = scmp.ne.s32.totalorder %s123, %s126
    %p132 = scmp.eq.s32.totalorder %s10, 0
    %p133 = por %p131, %p132
    %p134 = scmp.ne.s32.totalorder %s123, %s126
    %p135 = scmp.eq.s32.totalorder %s15, 1
    %p136 = por %p134, %p135
    %p137 = scmp.ne.s32.totalorder %s126, %s127
    %p138 = scmp.eq.s32.totalorder %s15, 0
    %p139 = por %p137, %p138
    %p140 = scmp.ne.s32.totalorder %s126, %s127
    %p141 = scmp.eq.s32.totalorder %s16, 1
    %p142 = por %p140, %p141
    %p144 = scmp.ne.s32.totalorder %s127, %s143
    %p145 = scmp.eq.s32.totalorder %s16, 0
    %p146 = por %p144, %p145
    %p147 = scmp.le.s32.totalorder 1, %s10
    %p148 = scmp.lt.s32.totalorder %s10, 3
    %p149 = pnand %p147, %p148
    %p150 = pneg %p149
    // Predicated region
    $region9: #{tpu_custom_call.1} parent=5 // pred_check
      _
    $region10: #{tpu_custom_call.1} parent=5 // pred_check_branch
      %152 = sbr.rel (%p149) target = $region12
    $region11: #{tpu_custom_call.1} parent=5 // pred_region
      %s153 = ssub.s32 %s10, 1
      // Predicated region
      $region13: #{tpu_custom_call.1} parent=11 // pred_check
        %p154 = pneg %p71
      $region14: #{tpu_custom_call.1} parent=11 // pred_check_branch
        %156 = sbr.rel (%p154) target = $region16
      $region15: #{tpu_custom_call.1} parent=11 // pred_region
        _
      $region16: #{tpu_custom_call.1} parent=11 // pred_fallthru
        _
      // Predicated region
      $region17: #{tpu_custom_call.1} parent=11 // pred_check
        %p157 = pneg %p92
      $region18: #{tpu_custom_call.1} parent=11 // pred_check_branch
        %159 = sbr.rel (%p157) target = $region20
      $region19: #{tpu_custom_call.1} parent=11 // pred_region
        _
      $region20: #{tpu_custom_call.1} parent=11 // pred_fallthru
        _
      // Predicated region
      $region21: #{tpu_custom_call.1} parent=11 // pred_check
        %p160 = pneg %p113
      $region22: #{tpu_custom_call.1} parent=11 // pred_check_branch
        %162 = sbr.rel (%p160) target = $region24
      $region23: #{tpu_custom_call.1} parent=11 // pred_region
        _
      $region24: #{tpu_custom_call.1} parent=11 // pred_fallthru
        _
    $region12: #{tpu_custom_call.1} parent=5 // pred_fallthru
      _
    %p163 = scmp.lt.s32.totalorder %s10, 2
    // Predicated region
    $region25: #{tpu_custom_call.1} parent=5 // pred_check
      %p164 = pneg %p163
    $region26: #{tpu_custom_call.1} parent=5 // pred_check_branch
      %166 = sbr.rel (%p164) target = $region28
    $region27: #{tpu_custom_call.1} parent=5 // pred_region
      // Predicated region
      $region29: #{tpu_custom_call.1} parent=27 // pred_check
        %p167 = pneg %p44
      $region30: #{tpu_custom_call.1} parent=27 // pred_check_branch
        %169 = sbr.rel (%p167) target = $region32
      $region31: #{tpu_custom_call.1} parent=27 // pred_region
        %s170 = smul.u32 2, %s18
        %p171 = scmp.lt.s32.totalorder %s17, 1
        %s172 = scalar_select %p171, %s17, 1
        %p173 = scmp.lt.s32.totalorder %s170, 1
        %s174 = scalar_select %p173, %s170, 1
        %s175 = smul.addr %s172, 2
        %s176 = sadd.s32 %s174, %s175
        %s177 = smul.addr %s176, 2
        %s178 = scalar_lea.vmem %s0, %s177
        %s179 = smul.u32 2, %s18
      $region32: #{tpu_custom_call.1} parent=27 // pred_fallthru
        _
    $region28: #{tpu_custom_call.1} parent=5 // pred_fallthru
      _
    %p180 = scmp.le.s32.totalorder 1, %s10
    %p181 = scmp.lt.s32.totalorder %s10, 3
    %p182 = pnand %p180, %p181
    %p183 = pneg %p182
    // Predicated region
    $region33: #{tpu_custom_call.1} parent=5 // pred_check
      _
    $region34: #{tpu_custom_call.1} parent=5 // pred_check_branch
      %185 = sbr.rel (%p182) target = $region36
    $region35: #{tpu_custom_call.1} parent=5 // pred_region
      %s186 = ssub.s32 %s10, 1
      %s187 = smul.u32 2, %s20
      %p188 = scmp.lt.s32.totalorder %s19, 1
      %s189 = scalar_select %p188, %s19, 1
      %p190 = scmp.lt.s32.totalorder %s187, 1
      %s191 = scalar_select %p190, %s187, 1
      %s192 = smul.addr %s189, 2
      %s193 = sadd.s32 %s191, %s192
      %s194 = smul.addr %s193, 2
      %s195 = scalar_lea.vmem %s0, %s194
      %p196 = pneg %p50
      %p197 = pneg %p47
      %p198 = pneg %p71
      %p199 = pneg %p68
      %p200 = pneg %p92
      %p201 = pneg %p89
      %p202 = pneg %p113
      %p203 = pneg %p110
      %p204 = pneg %p139
      %p205 = pneg %p136
      %p206 = scmp.lt.s32.totalorder %s19, 1
      %s207 = scalar_select %p206, %s19, 1
      %s208 = smul.addr %s207, 8
      %s209 = scalar_lea.vmem %s4, %s208
      %s210 = smul.u32 2, %s20
      %p211 = scmp.lt.s32.totalorder %s19, 1
      %s212 = scalar_select %p211, %s19, 1
      %p213 = scmp.lt.s32.totalorder %s210, 1
      %s214 = scalar_select %p213, %s210, 1
      %s215 = smul.addr %s212, 2
      %s216 = sadd.s32 %s214, %s215
      %s217 = smul.addr %s216, 2
      %s218 = scalar_lea.vmem %s0, %s217
      %s219 = smul.u32 2, %s20
      %p220 = scmp.lt.s32.totalorder %s19, 1
      %s221 = scalar_select %p220, %s19, 1
      %s222 = smul.addr %s221, 8
      %s223 = scalar_lea.vmem %s4, %s222
      %p225 = scmp.eq.s32.totalorder %s20, 0
      // Predicated region
      $region37: #{tpu_custom_call.1} parent=35 // pred_check
        %p226 = pneg %p225
      $region38: #{tpu_custom_call.1} parent=35 // pred_check_branch
        %228 = sbr.rel (%p226) target = $region40
      $region39: #{tpu_custom_call.1} parent=35 // pred_region
        %vm229 = vcmask 7168
        %230 = vst.msk [vmem:[#allocation2] sm:$0xff] %vm229, 0.0
      $region40: #{tpu_custom_call.1} parent=35 // pred_fallthru
        _
      %v231 = vld [vmem:[%s218] sm:$0xf]
      %v232 = vld [vmem:[%s1] sm:$0xf]
      %234 = vst [vmem:[#allocation1] ss:$4 sm:$0xff] %v231
      %v235 = vld.sshfl [vmem:[#allocation1] sm:$0xff pattern:$0x73625140]
      %v236 = vld.sshfl [vmem:[#allocation1 + $0x8] sm:$0xff pattern:$0x73625140]
      %vm237 = vcmask 31744
      %v239 = vsel %vm237, %v232, 0
      %vm241 = vcmask 1041408
      %v242 = vsel %vm241, %v235, 0
      %v244 = vsel %vm241, %v236, 0
      %246 = vmatpush.bf16.msra.mxu0 0
      %247 = vmatpush.bf16.msra.mxu0 0
      %248 = vmatpush.bf16.msra.mxu0 0
      %249 = vmatpush.bf16.msra.mxu0 0
      %250 = vmatpush.bf16.msra.mxu0 0
      %251 = vmatpush.bf16.msra.mxu0 0
      %252 = vmatpush.bf16.msra.mxu0 0
      %253 = vmatpush.bf16.msra.mxu0 %v242
      %254 = vmatmul.bf16.gmra.mxu0 %v239
      %v255 = vpop.f32.mrf.mxu0
      %v256 = vadd.f32 0.0, %v255
      %v257 = vpop.f32.mrf.mxu0
      %258 = vdwg.mxu0
      %259 = vmatpush.bf16.msra.mxu0 0
      %260 = vmatpush.bf16.msra.mxu0 0
      %261 = vmatpush.bf16.msra.mxu0 0
      %262 = vmatpush.bf16.msra.mxu0 0
      %263 = vmatpush.bf16.msra.mxu0 0
      %264 = vmatpush.bf16.msra.mxu0 0
      %265 = vmatpush.bf16.msra.mxu0 0
      %266 = vmatpush.bf16.msra.mxu0 %v244
      %267 = vmatmul.bf16.gmra.mxu0 %v239
      %v268 = vpop.f32.mrf.mxu0
      %v269 = vadd.f32 0.0, %v268
      %v270 = vpop.f32.mrf.mxu0
      %271 = vdwg.mxu0
      %v272 = vld [vmem:[%s2] sm:$0xff]
      %274 = vset.pattern.permute.xlu0 0
      %275 = vperm.xlu0 %274, %v272
      %v276 = vpop.permute.xlu0 %275
      %v278 = vmul.f32 %v256, %v276
      %v279 = vmul.f32 %v269, %v276
      %v280 = vld [vmem:[%s3] sm:$0xff]
      %282 = vset.pattern.permute.xlu0 0
      %283 = vperm.xlu0 %282, %v280
      %v284 = vpop.permute.xlu0 %283
      %v286 = vadd.f32 %v278, %v284
      %v287 = vadd.f32 %v279, %v284
      %v288 = vmax.f32 %v286, 0.0
      %v289 = vmax.f32 %v287, 0.0
      %v290 = vld [vmem:[#allocation2] sm:$0xff]
      %v291 = vadd.f32 %v288, %v289
      %292 = vadd.xlane.f32.xlu0 %v291
      %v293 = vpop.xlane.xlu0 %292
      %v294 = vadd.f32 %v290, %v293
      %vm295 = vcmask 7168
      %296 = vst.msk [vmem:[#allocation2] sm:$0xff] %vm295, %v294
      // Predicated region
      $region41: #{tpu_custom_call.1} parent=35 // pred_check
        %p297 = pneg %p225
      $region42: #{tpu_custom_call.1} parent=35 // pred_check_branch
        %299 = sbr.rel (%p297) target = $region44
      $region43: #{tpu_custom_call.1} parent=35 // pred_region
        %v300 = vld [vmem:[#allocation2] sm:$0xff]
        %v301 = vmul.f32 %v300, 0.00390625
        %302 = vst.msk [vmem:[%s223] sm:$0xff] %vm295, %v301
      $region44: #{tpu_custom_call.1} parent=35 // pred_fallthru
        _
      %p303 = scmp.lt.s32.totalorder %s19, 1
      %s304 = scalar_select %p303, %s19, 1
      %s305 = smul.addr %s304, 8
      %s306 = scalar_lea.vmem %s4, %s305
      // Predicated region
      $region45: #{tpu_custom_call.1} parent=35 // pred_check
        %p307 = pneg %p136
      $region46: #{tpu_custom_call.1} parent=35 // pred_check_branch
        %309 = sbr.rel (%p307) target = $region48
      $region47: #{tpu_custom_call.1} parent=35 // pred_region
        _
      $region48: #{tpu_custom_call.1} parent=35 // pred_fallthru
        _
    $region36: #{tpu_custom_call.1} parent=5 // pred_fallthru
      _
    %p310 = scmp.le.s32.totalorder 2, %s10
    // Predicated region
    $region49: #{tpu_custom_call.1} parent=5 // pred_check
      %p311 = pneg %p310
    $region50: #{tpu_custom_call.1} parent=5 // pred_check_branch
      %313 = sbr.rel (%p311) target = $region52
    $region51: #{tpu_custom_call.1} parent=5 // pred_region
      %s314 = ssub.s32 %s10, 2
      // Predicated region
      $region53: #{tpu_custom_call.1} parent=51 // pred_check
        %p315 = pneg %p142
      $region54: #{tpu_custom_call.1} parent=51 // pred_check_branch
        %317 = sbr.rel (%p315) target = $region56
      $region55: #{tpu_custom_call.1} parent=51 // pred_region
        %p318 = scmp.lt.s32.totalorder %s21, 1
        %s319 = scalar_select %p318, %s21, 1
        %s320 = smul.addr %s319, 8
        %s321 = scalar_lea.vmem %s4, %s320
      $region56: #{tpu_custom_call.1} parent=51 // pred_fallthru
        _
    $region52: #{tpu_custom_call.1} parent=5 // pred_fallthru
      _
  $region6: #{tpu_custom_call.1} parent=0 // loop_footer
    %s14 = sadd.s32 1, %s10
  $region7: #{tpu_custom_call.1} parent=0 // loop_footer_branch
    %9 = sbr.rel target = $region3
  $region8: #{tpu_custom_call.1} parent=0 // loop_exit
    _

</llo_original>
